<compile_context>
chip_gen: v7x
topology: tpu7x:2x2x1
jax: 0.10.0
libtpu: 0.0.40
codegen_flags: <defaults>
</compile_context>

<pallas_src>
import functools

import jax
import jax.numpy as jnp
from jax.experimental import pallas as pl
from jax.experimental.pallas import tpu as pltpu

PAD_MAX = 2   # largest conv padding among the branches (k=5, pad=2)
N_TAPS = 5    # every branch is expressed on a common 5-tap window


def _shift_taps(block, pos, L):
    """Return the 5 lane-shifted views of `block` (shape (C, T), T = tb*L).

    taps[t][:, g] == block[:, g + (t - 2)] when the shifted position stays
    inside the same length-L segment (same batch element), else 0 — exactly
    the zero-padding semantics of torch.nn.Conv1d.
    """
    C, T = block.shape
    zpad = jnp.zeros((C, PAD_MAX), block.dtype)
    ext = jnp.concatenate([zpad, block, zpad], axis=1)      # (C, T + 2*PAD_MAX)
    taps = []
    for t in range(N_TAPS):
        d = t - PAD_MAX
        v = ext[:, t:t + T]                                  # (C, T)
        if d != 0:
            valid = (pos + d >= 0) & (pos + d < L)           # (1, T) bool
            v = jnp.where(valid, v, 0.0)
        taps.append(v)
    return taps


def mkc_kernel(x_ref, pos_ref, w1_ref, w2_ref, o_ref, *, L, F):
    # x_ref  : (C_in, T)     lane-folded input tile, T = tb * L
    # pos_ref: (1, T) int32  position of each lane within its length-L segment
    # w1_ref : (4F, 5*C_in)  packed stage-1 (im2col) weights
    # w2_ref : (C_out, 8F)   packed stage-2 weights [wcat_123 | wcat_4 @ w35b taps]
    # o_ref  : (C_out, T)
    x = x_ref[...]
    pos = pos_ref[...]

    # stage 1: all four first-level convs in one MXU push, one big tanh (EUP)
    xim = jnp.concatenate(_shift_taps(x, pos, L), axis=0)            # (5*C_in, T)
    s1 = jnp.tanh(jnp.dot(w1_ref[...], xim,
                          preferred_element_type=jnp.float32))       # (4F, T)

    top = s1[:3 * F]   # tanh(c1) | tanh(c3) | tanh(c5)
    y = s1[3 * F:]     # tanh(c35a) — input to the second conv of the c35 branch

    # stage 2: 1x1 fuse conv (wcat folded onto the c35b taps) + final tanh
    z = jnp.concatenate([top] + _shift_taps(y, pos, L), axis=0)      # (8F, T)
    out = jnp.tanh(jnp.dot(w2_ref[...], z,
                           preferred_element_type=jnp.float32))      # (C_out, T)
    o_ref[...] = out.astype(o_ref.dtype)


def _pack_weights(w1, w3, w5, w35a, w35b, wcat):
    """Pack the five Conv1d weights into the two fused matmul weight matrices."""
    F, C_in = w1.shape[0], w1.shape[1]
    C_out = wcat.shape[0]

    # Stage 1: rows [c1 | c3 | c5 | c35a]; columns tap-major / channel-minor.
    # A branch with kernel size k, padding p places its tap j at global tap
    # t = j - p + PAD_MAX.
    w1p = jnp.zeros((4 * F, N_TAPS, C_in), jnp.float32)
    w1p = w1p.at[0 * F:1 * F, 2:3, :].set(jnp.transpose(w1, (0, 2, 1)))    # k=1, p=0
    w1p = w1p.at[1 * F:2 * F, 1:4, :].set(jnp.transpose(w3, (0, 2, 1)))    # k=3, p=1
    w1p = w1p.at[2 * F:3 * F, 0:5, :].set(jnp.transpose(w5, (0, 2, 1)))    # k=5, p=2
    w1p = w1p.at[3 * F:4 * F, 1:4, :].set(jnp.transpose(w35a, (0, 2, 1)))  # k=3, p=1
    w_stage1 = w1p.reshape(4 * F, N_TAPS * C_in)

    # Stage 2:
    #   out = tanh( wcat[:, :3F] @ [x1;x2;x3]
    #             + sum_t (wcat[:, 3F:] @ w35b[:, :, t]) @ y_shifted_t )
    wcat2 = wcat[:, :, 0]                                          # (C_out, 4F)
    w_eff = jnp.einsum('of,fpt->otp', wcat2[:, 3 * F:], w35b)      # (C_out, 5, F)
    w_stage2 = jnp.concatenate(
        [wcat2[:, :3 * F], w_eff.reshape(C_out, N_TAPS * F)], axis=1)
    return w_stage1, w_stage2


def _choose_tb(B, L, max_lanes):
    """Pick how many batch elements to fold into one lane-dense tile."""
    if B * L <= max_lanes:
        return B                       # everything in one (or few) big tile(s)
    for tb in range(B - 1, 0, -1):     # lane-aligned tiles for large problems
        if B % tb == 0 and tb * L <= max_lanes and (tb * L) % 128 == 0:
            return tb
    return B                           # fallback: single tile


def multi_kernel_conv(x, w1, w3, w5, w35a, w35b, wcat, *,
                      max_lanes_per_tile=4096):
    """x: (B, C_in, L) float32. Returns (B, C_out, L) float32."""
    B, C_in, L = x.shape
    F = w1.shape[0]
    C_out = wcat.shape[0]

    w_stage1, w_stage2 = _pack_weights(w1, w3, w5, w35a, w35b, wcat)

    # Lane-fold batch into the length axis -> lane-dense (C_in, B*L).
    xf = jnp.transpose(x, (1, 0, 2)).reshape(C_in, B * L)

    tb = _choose_tb(B, L, max_lanes_per_tile)
    T = tb * L
    n_tiles = (B * L) // T

    # In-segment lane position (identical for every tile, since tiles always
    # start at a batch boundary).
    pos = jnp.tile(jnp.arange(L, dtype=jnp.int32), tb).reshape(1, T)

    kern = functools.partial(mkc_kernel, L=L, F=F)
    out_flat = pl.pallas_call(
        kern,
        out_shape=jax.ShapeDtypeStruct((C_out, B * L), jnp.float32),
        grid_spec=pltpu.PrefetchScalarGridSpec(
            num_scalar_prefetch=0,
            grid=(n_tiles,),
            in_specs=[
                pl.BlockSpec((C_in, T), lambda i: (0, i)),
                pl.BlockSpec((1, T), lambda i: (0, 0)),
                pl.BlockSpec(w_stage1.shape, lambda i: (0, 0)),
                pl.BlockSpec(w_stage2.shape, lambda i: (0, 0)),
            ],
            out_specs=pl.BlockSpec((C_out, T), lambda i: (0, i)),
        ),
        compiler_params=pltpu.CompilerParams(
            dimension_semantics=("parallel",)),
    )(xf, pos, w_stage1, w_stage2)

    # Un-fold the lane axis back to (B, C_out, L).
    return jnp.transpose(out_flat.reshape(C_out, B, L), (1, 0, 2))


def _ref_forward(x, w1, w3, w5, w35a, w35b, wcat):
    """Plain-JAX reference (mirrors the PyTorch module, bias=False everywhere)."""
    def conv1d(inp, w, pad):
        return jax.lax.conv_general_dilated(
            inp, w, window_strides=(1,), padding=[(pad, pad)],
            dimension_numbers=("NCH", "OIH", "NCH"))
    x1 = jnp.tanh(conv1d(x, w1, 0))
    x2 = jnp.tanh(conv1d(x, w3, 1))
    x3 = jnp.tanh(conv1d(x, w5, 2))
    x4 = conv1d(jnp.tanh(conv1d(x, w35a, 1)), w35b, 2)
    xc = jnp.concatenate([x1, x2, x3, x4], axis=1)
    return jnp.tanh(conv1d(xc, wcat, 0))


if __name__ == "__main__":
    B, C_in, L = 2, 4, 16
    n_features = 2
    C_out = 3

    key = jax.random.PRNGKey(0)
    kx, k1, k3, k5, k35a, k35b, kcat = jax.random.split(key, 7)

    x = jax.random.normal(kx, (B, C_in, L), dtype=jnp.float32)
    # Conv1d weight layout: (out_channels, in_channels, kernel_size)
    w1 = 0.3 * jax.random.normal(k1, (n_features, C_in, 1), dtype=jnp.float32)
    w3 = 0.3 * jax.random.normal(k3, (n_features, C_in, 3), dtype=jnp.float32)
    w5 = 0.3 * jax.random.normal(k5, (n_features, C_in, 5), dtype=jnp.float32)
    w35a = 0.3 * jax.random.normal(k35a, (n_features, C_in, 3), dtype=jnp.float32)
    w35b = 0.3 * jax.random.normal(k35b, (n_features, n_features, 5), dtype=jnp.float32)
    wcat = 0.3 * jax.random.normal(kcat, (C_out, n_features * 4, 1), dtype=jnp.float32)

    out = multi_kernel_conv(x, w1, w3, w5, w35a, w35b, wcat)
    out = jax.block_until_ready(out)

    ref = _ref_forward(x, w1, w3, w5, w35a, w35b, wcat)
    assert out.shape == (B, C_out, L), out.shape
    assert jnp.allclose(out, ref, atol=2e-5, rtol=2e-5), \
        float(jnp.max(jnp.abs(out - ref)))

    print("KERNEL_OK")
</pallas_src>

<mosaic_0001>
module attributes {stable_mosaic.version = 11 : i64} {
  func.func @mkc_kernel(%arg0: i32, %arg1: memref<4x32xf32, #tpu.memory_space<vmem>>, %arg2: memref<1x32xi32, #tpu.memory_space<vmem>>, %arg3: memref<8x20xf32, #tpu.memory_space<vmem>>, %arg4: memref<3x16xf32, #tpu.memory_space<vmem>>, %arg5: memref<3x32xf32, #tpu.memory_space<vmem>>) attributes {dimension_semantics = [#tpu.dimension_semantics<parallel>], iteration_bounds = array<i64: 1>, scalar_prefetch = 0 : i64, scratch_operands = 0 : i64, tpu.core_type = #tpu.core_type<tc>, window_params = [{transform_indices = @transform_0, window_bounds = array<i64: 4, 32>}, {pipeline_mode = #tpu.pipeline_mode<synchronous>, transform_indices = @transform_1, window_bounds = array<i64: 1, 32>}, {pipeline_mode = #tpu.pipeline_mode<synchronous>, transform_indices = @transform_2, window_bounds = array<i64: 8, 20>}, {pipeline_mode = #tpu.pipeline_mode<synchronous>, transform_indices = @transform_3, window_bounds = array<i64: 3, 16>}, {transform_indices = @transform_4, window_bounds = array<i64: 3, 32>}]} {
    %c0 = arith.constant 0 : index
    %c0_0 = arith.constant 0 : index
    %0 = vector.load %arg1[%c0, %c0_0] : memref<4x32xf32, #tpu.memory_space<vmem>>, vector<4x32xf32>
    %c0_1 = arith.constant 0 : index
    %c0_2 = arith.constant 0 : index
    %1 = vector.load %arg2[%c0_1, %c0_2] : memref<1x32xi32, #tpu.memory_space<vmem>>, vector<1x32xi32>
    %cst = arith.constant 0.000000e+00 : f32
    %2 = vector.broadcast %cst : f32 to vector<4x2xf32>
    %3 = tpu.concatenate %2, %0, %2 in 1 : vector<4x2xf32>, vector<4x32xf32>, vector<4x2xf32> -> vector<4x36xf32>
    %4 = vector.extract_strided_slice %3 {offsets = [0, 0], sizes = [4, 32], strides = [1, 1]} : vector<4x36xf32> to vector<4x32xf32>
    %c-2_i32 = arith.constant -2 : i32
    %5 = vector.broadcast %c-2_i32 : i32 to vector<1x32xi32>
    %6 = arith.addi %1, %5 : vector<1x32xi32>
    %c0_i32 = arith.constant 0 : i32
    %7 = vector.broadcast %c0_i32 : i32 to vector<1x32xi32>
    %8 = arith.cmpi sge, %6, %7 : vector<1x32xi32>
    %c-2_i32_3 = arith.constant -2 : i32
    %9 = vector.broadcast %c-2_i32_3 : i32 to vector<1x32xi32>
    %10 = arith.addi %1, %9 : vector<1x32xi32>
    %c16_i32 = arith.constant 16 : i32
    %11 = vector.broadcast %c16_i32 : i32 to vector<1x32xi32>
    %12 = arith.cmpi slt, %10, %11 : vector<1x32xi32>
    %13 = arith.andi %8, %12 : vector<1x32xi1>
    %cst_4 = arith.constant 0.000000e+00 : f32
    %14 = vector.shape_cast %13 : vector<1x32xi1> to vector<1x32xi1>
    %15 = vector.broadcast %14 : vector<1x32xi1> to vector<4x32xi1>
    %16 = vector.broadcast %cst_4 : f32 to vector<4x32xf32>
    %17 = arith.select %15, %4, %16 : vector<4x32xi1>, vector<4x32xf32>
    %18 = vector.extract_strided_slice %3 {offsets = [0, 1], sizes = [4, 32], strides = [1, 1]} : vector<4x36xf32> to vector<4x32xf32>
    %c-1_i32 = arith.constant -1 : i32
    %19 = vector.broadcast %c-1_i32 : i32 to vector<1x32xi32>
    %20 = arith.addi %1, %19 : vector<1x32xi32>
    %c0_i32_5 = arith.constant 0 : i32
    %21 = vector.broadcast %c0_i32_5 : i32 to vector<1x32xi32>
    %22 = arith.cmpi sge, %20, %21 : vector<1x32xi32>
    %c-1_i32_6 = arith.constant -1 : i32
    %23 = vector.broadcast %c-1_i32_6 : i32 to vector<1x32xi32>
    %24 = arith.addi %1, %23 : vector<1x32xi32>
    %c16_i32_7 = arith.constant 16 : i32
    %25 = vector.broadcast %c16_i32_7 : i32 to vector<1x32xi32>
    %26 = arith.cmpi slt, %24, %25 : vector<1x32xi32>
    %27 = arith.andi %22, %26 : vector<1x32xi1>
    %cst_8 = arith.constant 0.000000e+00 : f32
    %28 = vector.shape_cast %27 : vector<1x32xi1> to vector<1x32xi1>
    %29 = vector.broadcast %28 : vector<1x32xi1> to vector<4x32xi1>
    %30 = vector.broadcast %cst_8 : f32 to vector<4x32xf32>
    %31 = arith.select %29, %18, %30 : vector<4x32xi1>, vector<4x32xf32>
    %32 = vector.extract_strided_slice %3 {offsets = [0, 2], sizes = [4, 32], strides = [1, 1]} : vector<4x36xf32> to vector<4x32xf32>
    %33 = vector.extract_strided_slice %3 {offsets = [0, 3], sizes = [4, 32], strides = [1, 1]} : vector<4x36xf32> to vector<4x32xf32>
    %c1_i32 = arith.constant 1 : i32
    %34 = vector.broadcast %c1_i32 : i32 to vector<1x32xi32>
    %35 = arith.addi %1, %34 : vector<1x32xi32>
    %c0_i32_9 = arith.constant 0 : i32
    %36 = vector.broadcast %c0_i32_9 : i32 to vector<1x32xi32>
    %37 = arith.cmpi sge, %35, %36 : vector<1x32xi32>
    %c1_i32_10 = arith.constant 1 : i32
    %38 = vector.broadcast %c1_i32_10 : i32 to vector<1x32xi32>
    %39 = arith.addi %1, %38 : vector<1x32xi32>
    %c16_i32_11 = arith.constant 16 : i32
    %40 = vector.broadcast %c16_i32_11 : i32 to vector<1x32xi32>
    %41 = arith.cmpi slt, %39, %40 : vector<1x32xi32>
    %42 = arith.andi %37, %41 : vector<1x32xi1>
    %cst_12 = arith.constant 0.000000e+00 : f32
    %43 = vector.shape_cast %42 : vector<1x32xi1> to vector<1x32xi1>
    %44 = vector.broadcast %43 : vector<1x32xi1> to vector<4x32xi1>
    %45 = vector.broadcast %cst_12 : f32 to vector<4x32xf32>
    %46 = arith.select %44, %33, %45 : vector<4x32xi1>, vector<4x32xf32>
    %47 = vector.extract_strided_slice %3 {offsets = [0, 4], sizes = [4, 32], strides = [1, 1]} : vector<4x36xf32> to vector<4x32xf32>
    %c2_i32 = arith.constant 2 : i32
    %48 = vector.broadcast %c2_i32 : i32 to vector<1x32xi32>
    %49 = arith.addi %1, %48 : vector<1x32xi32>
    %c0_i32_13 = arith.constant 0 : i32
    %50 = vector.broadcast %c0_i32_13 : i32 to vector<1x32xi32>
    %51 = arith.cmpi sge, %49, %50 : vector<1x32xi32>
    %c2_i32_14 = arith.constant 2 : i32
    %52 = vector.broadcast %c2_i32_14 : i32 to vector<1x32xi32>
    %53 = arith.addi %1, %52 : vector<1x32xi32>
    %c16_i32_15 = arith.constant 16 : i32
    %54 = vector.broadcast %c16_i32_15 : i32 to vector<1x32xi32>
    %55 = arith.cmpi slt, %53, %54 : vector<1x32xi32>
    %56 = arith.andi %51, %55 : vector<1x32xi1>
    %cst_16 = arith.constant 0.000000e+00 : f32
    %57 = vector.shape_cast %56 : vector<1x32xi1> to vector<1x32xi1>
    %58 = vector.broadcast %57 : vector<1x32xi1> to vector<4x32xi1>
    %59 = vector.broadcast %cst_16 : f32 to vector<4x32xf32>
    %60 = arith.select %58, %47, %59 : vector<4x32xi1>, vector<4x32xf32>
    %61 = tpu.concatenate %17, %31, %32, %46, %60 in 0 : vector<4x32xf32>, vector<4x32xf32>, vector<4x32xf32>, vector<4x32xf32>, vector<4x32xf32> -> vector<20x32xf32>
    %c0_17 = arith.constant 0 : index
    %c0_18 = arith.constant 0 : index
    %62 = vector.load %arg3[%c0_17, %c0_18] : memref<8x20xf32, #tpu.memory_space<vmem>>, vector<8x20xf32>
    %cst_19 = arith.constant dense<0.000000e+00> : vector<8x32xf32>
    %63 = tpu.matmul %62, %61, %cst_19 {dimension_numbers = #tpu.dot_dimension_numbers<[1], [0], [0], [1], [0, 0, 1, 1], [], []>} : vector<8x20xf32>, vector<20x32xf32>, vector<8x32xf32> -> vector<8x32xf32>
    %64 = math.tanh %63 : vector<8x32xf32>
    %65 = vector.extract_strided_slice %64 {offsets = [0, 0], sizes = [6, 32], strides = [1, 1]} : vector<8x32xf32> to vector<6x32xf32>
    %66 = vector.extract_strided_slice %64 {offsets = [6, 0], sizes = [2, 32], strides = [1, 1]} : vector<8x32xf32> to vector<2x32xf32>
    %cst_20 = arith.constant 0.000000e+00 : f32
    %67 = vector.broadcast %cst_20 : f32 to vector<2x2xf32>
    %68 = tpu.concatenate %67, %66, %67 in 1 : vector<2x2xf32>, vector<2x32xf32>, vector<2x2xf32> -> vector<2x36xf32>
    %69 = vector.extract_strided_slice %68 {offsets = [0, 0], sizes = [2, 32], strides = [1, 1]} : vector<2x36xf32> to vector<2x32xf32>
    %c-2_i32_21 = arith.constant -2 : i32
    %70 = vector.broadcast %c-2_i32_21 : i32 to vector<1x32xi32>
    %71 = arith.addi %1, %70 : vector<1x32xi32>
    %c0_i32_22 = arith.constant 0 : i32
    %72 = vector.broadcast %c0_i32_22 : i32 to vector<1x32xi32>
    %73 = arith.cmpi sge, %71, %72 : vector<1x32xi32>
    %c-2_i32_23 = arith.constant -2 : i32
    %74 = vector.broadcast %c-2_i32_23 : i32 to vector<1x32xi32>
    %75 = arith.addi %1, %74 : vector<1x32xi32>
    %c16_i32_24 = arith.constant 16 : i32
    %76 = vector.broadcast %c16_i32_24 : i32 to vector<1x32xi32>
    %77 = arith.cmpi slt, %75, %76 : vector<1x32xi32>
    %78 = arith.andi %73, %77 : vector<1x32xi1>
    %cst_25 = arith.constant 0.000000e+00 : f32
    %79 = vector.shape_cast %78 : vector<1x32xi1> to vector<1x32xi1>
    %80 = vector.broadcast %79 : vector<1x32xi1> to vector<2x32xi1>
    %81 = vector.broadcast %cst_25 : f32 to vector<2x32xf32>
    %82 = arith.select %80, %69, %81 : vector<2x32xi1>, vector<2x32xf32>
    %83 = vector.extract_strided_slice %68 {offsets = [0, 1], sizes = [2, 32], strides = [1, 1]} : vector<2x36xf32> to vector<2x32xf32>
    %c-1_i32_26 = arith.constant -1 : i32
    %84 = vector.broadcast %c-1_i32_26 : i32 to vector<1x32xi32>
    %85 = arith.addi %1, %84 : vector<1x32xi32>
    %c0_i32_27 = arith.constant 0 : i32
    %86 = vector.broadcast %c0_i32_27 : i32 to vector<1x32xi32>
    %87 = arith.cmpi sge, %85, %86 : vector<1x32xi32>
    %c-1_i32_28 = arith.constant -1 : i32
    %88 = vector.broadcast %c-1_i32_28 : i32 to vector<1x32xi32>
    %89 = arith.addi %1, %88 : vector<1x32xi32>
    %c16_i32_29 = arith.constant 16 : i32
    %90 = vector.broadcast %c16_i32_29 : i32 to vector<1x32xi32>
    %91 = arith.cmpi slt, %89, %90 : vector<1x32xi32>
    %92 = arith.andi %87, %91 : vector<1x32xi1>
    %cst_30 = arith.constant 0.000000e+00 : f32
    %93 = vector.shape_cast %92 : vector<1x32xi1> to vector<1x32xi1>
    %94 = vector.broadcast %93 : vector<1x32xi1> to vector<2x32xi1>
    %95 = vector.broadcast %cst_30 : f32 to vector<2x32xf32>
    %96 = arith.select %94, %83, %95 : vector<2x32xi1>, vector<2x32xf32>
    %97 = vector.extract_strided_slice %68 {offsets = [0, 2], sizes = [2, 32], strides = [1, 1]} : vector<2x36xf32> to vector<2x32xf32>
    %98 = vector.extract_strided_slice %68 {offsets = [0, 3], sizes = [2, 32], strides = [1, 1]} : vector<2x36xf32> to vector<2x32xf32>
    %c1_i32_31 = arith.constant 1 : i32
    %99 = vector.broadcast %c1_i32_31 : i32 to vector<1x32xi32>
    %100 = arith.addi %1, %99 : vector<1x32xi32>
    %c0_i32_32 = arith.constant 0 : i32
    %101 = vector.broadcast %c0_i32_32 : i32 to vector<1x32xi32>
    %102 = arith.cmpi sge, %100, %101 : vector<1x32xi32>
    %c1_i32_33 = arith.constant 1 : i32
    %103 = vector.broadcast %c1_i32_33 : i32 to vector<1x32xi32>
    %104 = arith.addi %1, %103 : vector<1x32xi32>
    %c16_i32_34 = arith.constant 16 : i32
    %105 = vector.broadcast %c16_i32_34 : i32 to vector<1x32xi32>
    %106 = arith.cmpi slt, %104, %105 : vector<1x32xi32>
    %107 = arith.andi %102, %106 : vector<1x32xi1>
    %cst_35 = arith.constant 0.000000e+00 : f32
    %108 = vector.shape_cast %107 : vector<1x32xi1> to vector<1x32xi1>
    %109 = vector.broadcast %108 : vector<1x32xi1> to vector<2x32xi1>
    %110 = vector.broadcast %cst_35 : f32 to vector<2x32xf32>
    %111 = arith.select %109, %98, %110 : vector<2x32xi1>, vector<2x32xf32>
    %112 = vector.extract_strided_slice %68 {offsets = [0, 4], sizes = [2, 32], strides = [1, 1]} : vector<2x36xf32> to vector<2x32xf32>
    %c2_i32_36 = arith.constant 2 : i32
    %113 = vector.broadcast %c2_i32_36 : i32 to vector<1x32xi32>
    %114 = arith.addi %1, %113 : vector<1x32xi32>
    %c0_i32_37 = arith.constant 0 : i32
    %115 = vector.broadcast %c0_i32_37 : i32 to vector<1x32xi32>
    %116 = arith.cmpi sge, %114, %115 : vector<1x32xi32>
    %c2_i32_38 = arith.constant 2 : i32
    %117 = vector.broadcast %c2_i32_38 : i32 to vector<1x32xi32>
    %118 = arith.addi %1, %117 : vector<1x32xi32>
    %c16_i32_39 = arith.constant 16 : i32
    %119 = vector.broadcast %c16_i32_39 : i32 to vector<1x32xi32>
    %120 = arith.cmpi slt, %118, %119 : vector<1x32xi32>
    %121 = arith.andi %116, %120 : vector<1x32xi1>
    %cst_40 = arith.constant 0.000000e+00 : f32
    %122 = vector.shape_cast %121 : vector<1x32xi1> to vector<1x32xi1>
    %123 = vector.broadcast %122 : vector<1x32xi1> to vector<2x32xi1>
    %124 = vector.broadcast %cst_40 : f32 to vector<2x32xf32>
    %125 = arith.select %123, %112, %124 : vector<2x32xi1>, vector<2x32xf32>
    %126 = tpu.concatenate %65, %82, %96, %97, %111, %125 in 0 : vector<6x32xf32>, vector<2x32xf32>, vector<2x32xf32>, vector<2x32xf32>, vector<2x32xf32>, vector<2x32xf32> -> vector<16x32xf32>
    %c0_41 = arith.constant 0 : index
    %c0_42 = arith.constant 0 : index
    %127 = vector.load %arg4[%c0_41, %c0_42] : memref<3x16xf32, #tpu.memory_space<vmem>>, vector<3x16xf32>
    %cst_43 = arith.constant dense<0.000000e+00> : vector<3x32xf32>
    %128 = tpu.matmul %127, %126, %cst_43 {dimension_numbers = #tpu.dot_dimension_numbers<[1], [0], [0], [1], [0, 0, 1, 1], [], []>} : vector<3x16xf32>, vector<16x32xf32>, vector<3x32xf32> -> vector<3x32xf32>
    %129 = math.tanh %128 : vector<3x32xf32>
    %c0_44 = arith.constant 0 : index
    %c0_45 = arith.constant 0 : index
    %130 = vector.load %arg5[%c0_44, %c0_45] : memref<3x32xf32, #tpu.memory_space<vmem>>, vector<3x32xf32>
    tpu.vector_store %arg5[%c0_44, %c0_45], %129 {strides = array<i32>} : memref<3x32xf32, #tpu.memory_space<vmem>>, vector<3x32xf32>,
    return
  }
  func.func @transform_0(%arg0: i32) -> (i32, i32) {
    %c0_i32 = arith.constant 0 : i32
    %c0_i32_0 = arith.constant 0 : i32
    return %c0_i32, %arg0 : i32, i32
  }
  func.func @transform_1(%arg0: i32) -> (i32, i32) {
    %c0_i32 = arith.constant 0 : i32
    %c0_i32_0 = arith.constant 0 : i32
    %c0_i32_1 = arith.constant 0 : i32
    return %c0_i32, %c0_i32_0 : i32, i32
  }
  func.func @transform_2(%arg0: i32) -> (i32, i32) {
    %c0_i32 = arith.constant 0 : i32
    %c0_i32_0 = arith.constant 0 : i32
    %c0_i32_1 = arith.constant 0 : i32
    return %c0_i32, %c0_i32_0 : i32, i32
  }
  func.func @transform_3(%arg0: i32) -> (i32, i32) {
    %c0_i32 = arith.constant 0 : i32
    %c0_i32_0 = arith.constant 0 : i32
    %c0_i32_1 = arith.constant 0 : i32
    return %c0_i32, %c0_i32_0 : i32, i32
  }
  func.func @transform_4(%arg0: i32) -> (i32, i32) {
    %c0_i32 = arith.constant 0 : i32
    %c0_i32_0 = arith.constant 0 : i32
    return %c0_i32, %arg0 : i32, i32
  }
}

</mosaic_0001>

<llo_original>
// kernel: tpu_custom_call.1
$region0: #{tpu_custom_call.1}
  #allocation0 [shape = 'u32[]', space=smem, size = 0x4, offset = 0x4, fixed_abs, tag = 'smem constant byte address 0x4 - core index']
  #allocation1 [shape = 'u32[144,128]{1,0:T(1,128)}', space=vmem, size = 0x12000, scoped, tag = 'internal scratch']
  %s0 = inlined_call_operand.hbm [shape: f32[4,32], index: 0, kind: input, shape index: {}]
  %s1 = inlined_call_operand.vmem [shape: s32[1,32], index: 1, kind: input, shape index: {}]
  %s2 = inlined_call_operand.hbm [shape: f32[8,20], index: 2, kind: input, shape index: {}]
  %s3 = inlined_call_operand.vmem [shape: f32[3,16], index: 3, kind: input, shape index: {}]
  %s4 = inlined_call_operand.hbm [shape: f32[3,32], index: 4, kind: output, shape index: {}]
  %s5 = sld [smem:[#allocation0]]
  $region34: #{tpu_custom_call.1} parent=0
    _
  %s7 = ssub.s32 1, %s5
  %s8 = scalar_select 0, %s7, %s5
  $region1: #{tpu_custom_call.1} parent=0
    #allocation2 [shape = 'u8[2048]{0}', space=vmem, size = 0x800, scoped, tag = 'input window, operand 0, single buffered']
    #allocation3 [shape = 's32[1]{0}', space=sflag, size = 0x4, scoped, tag = 'scoped memory for tpu_custom_call.1']
    #allocation4 [shape = 's32[1]{0}', space=sflag, size = 0x4, scoped, tag = 'scoped memory for tpu_custom_call.1']
    #allocation5 [shape = 'u8[4096]{0}', space=vmem, size = 0x1000, scoped, tag = 'input window, operand 2, single buffered']
    #allocation6 [shape = 's32[1]{0}', space=sflag, size = 0x4, scoped, tag = 'scoped memory for tpu_custom_call.1']
    #allocation7 [shape = 'u8[2048]{0}', space=vmem, size = 0x800, scoped, tag = 'output window, operand 0, single buffered']
    %9 = vsyncpa [#allocation3], 0
    %10 = vsyncpa [#allocation6], 0
    %11 = vsyncpa [#allocation4], 0
    // Predicated region
    $region2: #{tpu_custom_call.1} parent=1 // pred_check
      _
    $region3: #{tpu_custom_call.1} parent=1 // pred_check_branch
      %13 = sbr.rel (0) target = $region5
    $region4: #{tpu_custom_call.1} parent=1 // pred_region
      %s15 = ssub.s32 64, 64
      %16 = vsyncadd [#allocation3], %s15
      %s18 = sshll.u32 [#allocation2], 4
      %s19 = int_to_ptr.vmem [resolvable:$true] %s18
      %21 = dma.hbm_to_vmem [thread:$0]  %s0, 64, %s19, [#allocation3]
    $region5: #{tpu_custom_call.1} parent=1 // pred_fallthru
      _
    // Predicated region
    $region6: #{tpu_custom_call.1} parent=1 // pred_check
      _
    $region7: #{tpu_custom_call.1} parent=1 // pred_check_branch
      %23 = sbr.rel (0) target = $region9
    $region8: #{tpu_custom_call.1} parent=1 // pred_region
      _
    $region9: #{tpu_custom_call.1} parent=1 // pred_fallthru
      _
    // Predicated region
    $region10: #{tpu_custom_call.1} parent=1 // pred_check
      _
    $region11: #{tpu_custom_call.1} parent=1 // pred_check_branch
      %25 = sbr.rel (0) target = $region13
    $region12: #{tpu_custom_call.1} parent=1 // pred_region
      %s27 = ssub.s32 128, 128
      %28 = vsyncadd [#allocation6], %s27
      %s30 = sshll.u32 [#allocation5], 4
      %s31 = int_to_ptr.vmem [resolvable:$true] %s30
      %33 = dma.hbm_to_vmem [thread:$0]  %s2, 128, %s31, [#allocation6]
    $region13: #{tpu_custom_call.1} parent=1 // pred_fallthru
      _
    // Predicated region
    $region14: #{tpu_custom_call.1} parent=1 // pred_check
      _
    $region15: #{tpu_custom_call.1} parent=1 // pred_check_branch
      %35 = sbr.rel (0) target = $region17
    $region16: #{tpu_custom_call.1} parent=1 // pred_region
      _
    $region17: #{tpu_custom_call.1} parent=1 // pred_fallthru
      _
    // Predicated region
    $region18: #{tpu_custom_call.1} parent=1 // pred_check
      _
    $region19: #{tpu_custom_call.1} parent=1 // pred_check_branch
      %37 = sbr.rel (0) target = $region21
    $region20: #{tpu_custom_call.1} parent=1 // pred_region
      %38 = dma.done [#allocation3], 64
    $region21: #{tpu_custom_call.1} parent=1 // pred_fallthru
      _
    // Predicated region
    $region22: #{tpu_custom_call.1} parent=1 // pred_check
      _
    $region23: #{tpu_custom_call.1} parent=1 // pred_check_branch
      %40 = sbr.rel (0) target = $region25
    $region24: #{tpu_custom_call.1} parent=1 // pred_region
      %41 = dma.done [#allocation6], 128
    $region25: #{tpu_custom_call.1} parent=1 // pred_fallthru
      _
    %v42 = vld [vmem:[#allocation2] sm:$0xf]
    %v43 = vld [vmem:[%s1] sm:$0x1]
    %45 = vrot.lane.b32.xlu0 %v42, 2
    %v46 = vpop.permute.xlu0 %45
    %vm48 = vcmask 15360
    %v49 = vsel %vm48, 0.0, %v46
    %vm50 = vcmask 277504
    %v51 = vsel %vm50, %v49, 0.0
    %v52 = vadd.s32 %v43, 4294967294
    %vm53 = vcmp.ge.s32.totalorder %v52, 0
    %vm54 = vcmp.lt.s32.totalorder %v52, 16
    %vm55 = vmand %vm53, %vm54
    %v56 = vsel %vm55, 1, 0
    %v57 = vlaneseq
    %v58 = vshrl.u32 %v57, 7
    %v59 = vsub.s32 0, %v58
    %v60 = vrot.slane %v56, %v59
    %vm61 = vcmp.eq.s32.totalorder %v60, 1
    %v62 = vsel %vm61, %v51, 0.0
    %v63 = vadd.s32 %v43, 4294967295
    %vm64 = vcmp.ge.s32.totalorder %v63, 0
    %vm65 = vcmp.lt.s32.totalorder %v63, 16
    %vm66 = vmand %vm64, %vm65
    %v67 = vsel %vm66, 1, 0
    %v68 = vlaneseq
    %v69 = vshrl.u32 %v68, 7
    %v70 = vsub.s32 0, %v69
    %v71 = vrot.slane %v67, %v70
    %vm72 = vcmp.eq.s32.totalorder %v71, 1
    %74 = vrot.lane.b32.xlu0 %v51, 127
    %v75 = vpop.permute.xlu0 %74
    %v77 = vsel %vm72, %v75, 0.0
    %v78 = vadd.s32 %v43, 1
    %vm79 = vcmp.ge.s32.totalorder %v78, 0
    %vm80 = vcmp.lt.s32.totalorder %v78, 16
    %vm81 = vmand %vm79, %vm80
    %v82 = vsel %vm81, 1, 0
    %v83 = vlaneseq
    %v84 = vshrl.u32 %v83, 7
    %v85 = vsub.s32 0, %v84
    %v86 = vrot.slane %v82, %v85
    %vm87 = vcmp.eq.s32.totalorder %v86, 1
    %88 = vrot.lane.b32.xlu0 %v51, 125
    %v89 = vpop.permute.xlu0 %88
    %v91 = vsel %vm87, %v89, 0.0
    %v92 = vadd.s32 %v43, 2
    %vm93 = vcmp.ge.s32.totalorder %v92, 0
    %vm94 = vcmp.lt.s32.totalorder %v92, 16
    %vm95 = vmand %vm93, %vm94
    %v96 = vsel %vm95, 1, 0
    %v97 = vlaneseq
    %v98 = vshrl.u32 %v97, 7
    %v99 = vsub.s32 0, %v98
    %v100 = vrot.slane %v96, %v99
    %vm101 = vcmp.eq.s32.totalorder %v100, 1
    %102 = vrot.lane.b32.xlu0 %v51, 124
    %v103 = vpop.permute.xlu0 %102
    %v105 = vsel %vm101, %v103, 0.0
    %v107 = vrot.slane %v77, 4
    %109 = vrot.lane.b32.xlu0 %v51, 126
    %v110 = vpop.permute.xlu0 %109
    %v113 = vrot.slane %v91, 4
    %vm115 = vcmask 1043456
    %v116 = vsel %vm115, %v62, %v107
    %v117 = vsel %vm115, %v110, %v113
    %v118 = vld [vmem:[#allocation5] sm:$0xff]
    %vm119 = vcmask 162816
    %v121 = vsel %vm119, %v118, 0
    %v124 = vsel %vm115, %v105, 0
    %126 = vmatprep.subr.mxu0 0.0
    %127 = vmatpush1.msra.mxu0 %v116
    %128 = vmatprep.subr.mxu0 0.0
    %129 = vmatpush1.msra.mxu0 %v117
    %130 = vmatprep.subr.mxu0 0.0
    %131 = vmatpush1.msra.mxu0 %v124
    %132 = vmatprep.subr.mxu0 0.0
    %133 = vmatpush1.msra.mxu0 0.0
    %134 = vmatprep.subr.mxu0 0.0
    %135 = vmatpush1.msra.mxu0 0.0
    %136 = vmatprep.subr.mxu0 0.0
    %137 = vmatpush1.msra.mxu0 0.0
    %138 = vmatprep.subr.mxu0 0.0
    %139 = vmatpush1.msra.mxu0 0.0
    %140 = vmatprep.subr.mxu0 0.0
    %141 = vmatpush1.msra.mxu0 0.0
    %142 = vmatprep.subr.mxu0 0.0
    %143 = vmatpush1.msra.mxu0 0.0
    %144 = vmatprep.subr.mxu0 0.0
    %145 = vmatpush1.msra.mxu0 0.0
    %146 = vmatprep.subr.mxu0 0.0
    %147 = vmatpush1.msra.mxu0 0.0
    %148 = vmatprep.subr.mxu0 0.0
    %149 = vmatpush1.msra.mxu0 0.0
    %150 = vmatprep.subr.mxu0 0.0
    %151 = vmatpush1.msra.mxu0 0.0
    %152 = vmatprep.subr.mxu0 0.0
    %153 = vmatpush1.msra.mxu0 0.0
    %154 = vmatprep.subr.mxu0 0.0
    %155 = vmatpush1.msra.mxu0 0.0
    %156 = vmatprep.subr.mxu0 0.0
    %157 = vmatpush1.msra.mxu0 0.0
    %158 = vmatprep.subr.mxu0 0.0
    %159 = vmatpush1.msra.mxu0 0.0
    %160 = vmatprep.subr.mxu0 0.0
    %161 = vmatpush1.msra.mxu0 0.0
    %162 = vmatprep.subr.mxu0 0.0
    %163 = vmatpush1.msra.mxu0 0.0
    %164 = vmatprep.subr.mxu0 0.0
    %165 = vmatpush1.msra.mxu0 0.0
    %166 = vmatprep.subr.mxu0 0.0
    %167 = vmatpush1.msra.mxu0 0.0
    %168 = vmatprep.subr.mxu0 0.0
    %169 = vmatpush1.msra.mxu0 0.0
    %170 = vmatprep.subr.mxu0 0.0
    %171 = vmatpush1.msra.mxu0 0.0
    %172 = vmatprep.subr.mxu0 0.0
    %173 = vmatpush1.msra.mxu0 0.0
    %174 = vmatprep.subr.mxu0 0.0
    %175 = vmatpush1.msra.mxu0 0.0
    %176 = vmatprep.subr.mxu0 0.0
    %177 = vmatpush1.msra.mxu0 0.0
    %178 = vmatprep.subr.mxu0 0.0
    %179 = vmatpush1.msra.mxu0 0.0
    %180 = vmatprep.subr.mxu0 0.0
    %181 = vmatpush1.msra.mxu0 0.0
    %182 = vmatprep.subr.mxu0 0.0
    %183 = vmatpush1.msra.mxu0 0.0
    %184 = vmatprep.subr.mxu0 0.0
    %185 = vmatpush1.msra.mxu0 0.0
    %186 = vmatprep.subr.mxu0 0.0
    %187 = vmatpush1.msra.mxu0 0.0
    %188 = vmatprep.subr.mxu0 0.0
    %189 = vmatpush1.msra.mxu0 0.0
    %190 = vmatprep.mubr.f32.mxu0 0.0
    %191 = vmatmul.mubr.f32.gmra.mrb[0].mxu0 %v121
    %v192 = vpop.f32.mrb[0].mxu0
    %v193 = vadd.f32 0.0, %v192
    %v194 = vpop.f32.mrb[0].mxu0
    %195 = vdwg.mxu0
    %v196 = vtanh.pop %v193
    %v198 = vrot.slane %v196, 6
    %199 = vrot.lane.b32.xlu0 %v198, 2
    %v200 = vpop.permute.xlu0 %199
    %v202 = vsel %vm48, 0.0, %v200
    %v203 = vsel %vm50, %v202, 0.0
    %v204 = vsel %vm61, %v203, 0.0
    %206 = vrot.lane.b32.xlu0 %v203, 127
    %v207 = vpop.permute.xlu0 %206
    %v209 = vsel %vm72, %v207, 0.0
    %210 = vrot.lane.b32.xlu0 %v203, 125
    %v211 = vpop.permute.xlu0 %210
    %v213 = vsel %vm87, %v211, 0.0
    %214 = vrot.lane.b32.xlu0 %v203, 124
    %v215 = vpop.permute.xlu0 %214
    %v217 = vsel %vm101, %v215, 0.0
    %v219 = vrot.slane %v204, 2
    %v221 = vrot.slane %v203, 6
    %222 = vrot.lane.b32.xlu0 %v221, 126
    %v223 = vpop.permute.xlu0 %222
    %v226 = vrot.slane %v213, 4
    %v229 = vrot.slane %v217, 2
    %vm231 = vcmask 1045504
    %v232 = vsel %vm231, %v196, %v219
    %vm233 = vcmask 1041408
    %v234 = vsel %vm233, %v209, %v223
    %v235 = vsel %vm115, %v234, %v226
    %v236 = vsel %vm231, %v235, %v229
    %v237 = vld [vmem:[%s3] sm:$0x7]
    %vm238 = vcmask 130048
    %v240 = vsel %vm238, %v237, 0
    %242 = vmatprep.subr.mxu0 0.0
    %243 = vmatpush1.msra.mxu0 %v232
    %244 = vmatprep.subr.mxu0 0.0
    %245 = vmatpush1.msra.mxu0 %v236
    %246 = vmatprep.subr.mxu0 0.0
    %247 = vmatpush1.msra.mxu0 0.0
    %248 = vmatprep.subr.mxu0 0.0
    %249 = vmatpush1.msra.mxu0 0.0
    %250 = vmatprep.subr.mxu0 0.0
    %251 = vmatpush1.msra.mxu0 0.0
    %252 = vmatprep.subr.mxu0 0.0
    %253 = vmatpush1.msra.mxu0 0.0
    %254 = vmatprep.subr.mxu0 0.0
    %255 = vmatpush1.msra.mxu0 0.0
    %256 = vmatprep.subr.mxu0 0.0
    %257 = vmatpush1.msra.mxu0 0.0
    %258 = vmatprep.subr.mxu0 0.0
    %259 = vmatpush1.msra.mxu0 0.0
    %260 = vmatprep.subr.mxu0 0.0
    %261 = vmatpush1.msra.mxu0 0.0
    %262 = vmatprep.subr.mxu0 0.0
    %263 = vmatpush1.msra.mxu0 0.0
    %264 = vmatprep.subr.mxu0 0.0
    %265 = vmatpush1.msra.mxu0 0.0
    %266 = vmatprep.subr.mxu0 0.0
    %267 = vmatpush1.msra.mxu0 0.0
    %268 = vmatprep.subr.mxu0 0.0
    %269 = vmatpush1.msra.mxu0 0.0
    %270 = vmatprep.subr.mxu0 0.0
    %271 = vmatpush1.msra.mxu0 0.0
    %272 = vmatprep.subr.mxu0 0.0
    %273 = vmatpush1.msra.mxu0 0.0
    %274 = vmatprep.subr.mxu0 0.0
    %275 = vmatpush1.msra.mxu0 0.0
    %276 = vmatprep.subr.mxu0 0.0
    %277 = vmatpush1.msra.mxu0 0.0
    %278 = vmatprep.subr.mxu0 0.0
    %279 = vmatpush1.msra.mxu0 0.0
    %280 = vmatprep.subr.mxu0 0.0
    %281 = vmatpush1.msra.mxu0 0.0
    %282 = vmatprep.subr.mxu0 0.0
    %283 = vmatpush1.msra.mxu0 0.0
    %284 = vmatprep.subr.mxu0 0.0
    %285 = vmatpush1.msra.mxu0 0.0
    %286 = vmatprep.subr.mxu0 0.0
    %287 = vmatpush1.msra.mxu0 0.0
    %288 = vmatprep.subr.mxu0 0.0
    %289 = vmatpush1.msra.mxu0 0.0
    %290 = vmatprep.subr.mxu0 0.0
    %291 = vmatpush1.msra.mxu0 0.0
    %292 = vmatprep.subr.mxu0 0.0
    %293 = vmatpush1.msra.mxu0 0.0
    %294 = vmatprep.subr.mxu0 0.0
    %295 = vmatpush1.msra.mxu0 0.0
    %296 = vmatprep.subr.mxu0 0.0
    %297 = vmatpush1.msra.mxu0 0.0
    %298 = vmatprep.subr.mxu0 0.0
    %299 = vmatpush1.msra.mxu0 0.0
    %300 = vmatprep.subr.mxu0 0.0
    %301 = vmatpush1.msra.mxu0 0.0
    %302 = vmatprep.subr.mxu0 0.0
    %303 = vmatpush1.msra.mxu0 0.0
    %304 = vmatprep.subr.mxu0 0.0
    %305 = vmatpush1.msra.mxu0 0.0
    %306 = vmatprep.mubr.f32.mxu0 0.0
    %307 = vmatmul.mubr.f32.gmra.mrb[0].mxu0 %v240
    %v308 = vpop.f32.mrb[0].mxu0
    %v309 = vadd.f32 0.0, %v308
    %v310 = vpop.f32.mrb[0].mxu0
    %311 = vdwg.mxu0
    %v312 = vtanh.pop %v309
    %vm313 = vcmask 256000
    %314 = vst.msk [vmem:[#allocation7] sm:$0x7] %vm313, %v312
    // Predicated region
    $region26: #{tpu_custom_call.1} parent=1 // pred_check
      _
    $region27: #{tpu_custom_call.1} parent=1 // pred_check_branch
      %316 = sbr.rel (0) target = $region29
    $region28: #{tpu_custom_call.1} parent=1 // pred_region
      %s318 = ssub.s32 64, 64
      %319 = vsyncadd [#allocation4], %s318
      %s321 = sshll.u32 [#allocation7], 4
      %s322 = int_to_ptr.vmem [resolvable:$true] %s321
      %324 = dma.vmem_to_hbm [thread:$0]  %s322, 64, %s4, [#allocation4]
    $region29: #{tpu_custom_call.1} parent=1 // pred_fallthru
      _
    // Predicated region
    $region30: #{tpu_custom_call.1} parent=1 // pred_check
      _
    $region31: #{tpu_custom_call.1} parent=1 // pred_check_branch
      %326 = sbr.rel (0) target = $region33
    $region32: #{tpu_custom_call.1} parent=1 // pred_region
      %327 = dma.done [#allocation4], 64
    $region33: #{tpu_custom_call.1} parent=1 // pred_fallthru
      _
    %328 = vsyncpa [#allocation3], 1
    %329 = vsyncpa [#allocation6], 1
    %330 = vsyncpa [#allocation4], 1

</llo_original>
